<compile_context>
chip_gen: v5e
topology: v5e:2x2
jax: 0.10.0
libtpu: 0.0.40
codegen_flags: <defaults>
</compile_context>

<pallas_src>
import numpy as np
import jax
import jax.numpy as jnp
from jax.experimental import pallas as pl
from jax.experimental.pallas import tpu as pltpu

NCORES = 2  # split the mask axis across 2 TensorCores on v7x; serializes harmlessly on v5e/v6e


# ----------------------------- Pallas kernel --------------------------------
def _sbsm_feature_mask_kernel(fm_ref, msk_ref, xr_ref, xtwm_ref, bm_ref, masks_ref,
                              sal_ref, feats_sc, odist_sc):
    n = pl.program_id(1)

    @pl.when(n == 0)
    def _():
        # feats = (interp(feature_map) * mask).sum((2,3)) / mask.sum((2,3))  -> (B, D)
        fm = fm_ref[...]                                    # (B, D, HW) f32
        msk = msk_ref[...]                                  # (B, HW)    f32
        num = jnp.sum(fm * msk[:, None, :], axis=-1)        # (B, D)
        den = jnp.sum(msk, axis=-1, keepdims=True)          # (B, 1)
        feats = num * pl.reciprocal(den, approx=True)       # EUP, not VALU divide
        feats_sc[...] = feats
        # o_dist = cdist(feats, x_r)                        -> (B, 1)
        d = feats - xr_ref[...]
        odist_sc[...] = jnp.sqrt(jnp.sum(d * d, axis=-1, keepdims=True))
        # zero this core's resident saliency accumulator
        sal_ref[...] = jnp.zeros_like(sal_ref)

    masks = masks_ref[...]                                  # (Nt, HW) bf16, exact 0/1
    xtwm = xtwm_ref[...]                                    # (HW, D)  bf16  (= x^T @ Wm)
    inv_hw = 1.0 / xtwm.shape[0]                            # static Python float

    # model(masks * x) = GAP(masks*x) @ Wm + bm = (masks @ (x^T Wm)) / HW + bm  -> (Nt, D)
    emb = (jnp.dot(masks, xtwm, preferred_element_type=jnp.float32) * inv_hw
           + bm_ref[...])

    feats = feats_sc[...]                                   # (B, D)
    o_dist = odist_sc[...]                                  # (B, 1)

    # m_dist = cdist(feats, emb).  B and D are tiny here; keep the broadcast form.
    # TODO(synk): if B/D grow, switch to |f|^2 + |e|^2 - 2 f@e^T on the MXU.
    diff = feats[:, None, :] - emb[None, :, :]              # (B, Nt, D)
    m_dist = jnp.sqrt(jnp.sum(diff * diff, axis=-1))        # (B, Nt)

    # K = (1 - masks) * relu(m_dist - o_dist); per-tile contribution to K.sum over N:
    #   sum_n w[:, n] * (1 - masks[n, :]) = rowsum(w) - w @ masks   (no (1-masks) temp)
    w = jnp.maximum(m_dist - o_dist, 0.0)                   # (B, Nt) f32
    rowsum = jnp.sum(w, axis=-1, keepdims=True)             # (B, 1)
    neg = jnp.dot(w.astype(masks.dtype), masks,
                  preferred_element_type=jnp.float32)       # (B, HW)
    sal_ref[...] += rowsum - neg


def sbsm_feature_mask_pallas(fm_flat, mask_flat, x_r, xtwm_bf16, bm, masks_bf16, n_tile):
    B, D, HW = fm_flat.shape
    Npad = masks_bf16.shape[0]
    tiles_per_core = Npad // (n_tile * NCORES)

    # explicit VMEM budget from the chosen tile (leave headroom; v7x has 64 MiB total)
    vmem_bytes = (2 * n_tile * HW * 2          # double-buffered bf16 masks tile
                  + B * D * HW * 4             # resident feature map
                  + 3 * B * HW * 4             # pooling mask + saliency accumulator
                  + HW * D * 2                 # folded reference image
                  + (2 << 20))                 # headroom (scratch, small operands)
    vmem_limit = int(min(max(vmem_bytes, 4 << 20), 48 << 20))

    partial = pl.pallas_call(
        _sbsm_feature_mask_kernel,
        out_shape=jax.ShapeDtypeStruct((NCORES, B, HW), jnp.float32),
        grid_spec=pltpu.PrefetchScalarGridSpec(
            num_scalar_prefetch=0,
            grid=(NCORES, tiles_per_core),
            in_specs=[
                pl.BlockSpec((B, D, HW), lambda c, n: (0, 0, 0)),     # fm (resident)
                pl.BlockSpec((B, HW), lambda c, n: (0, 0)),           # pooling mask
                pl.BlockSpec((1, D), lambda c, n: (0, 0)),            # x_r
                pl.BlockSpec((HW, D), lambda c, n: (0, 0)),           # x^T @ Wm (bf16)
                pl.BlockSpec((1, D), lambda c, n: (0, 0)),            # bm
                pl.BlockSpec((n_tile, HW),
                             lambda c, n: (c * tiles_per_core + n, 0)),  # masks tile
            ],
            out_specs=pl.BlockSpec((None, B, HW), lambda c, n: (c, 0, 0)),
            scratch_shapes=[pltpu.VMEM((B, D), jnp.float32),   # feats
                            pltpu.VMEM((B, 1), jnp.float32)],  # o_dist
        ),
        compiler_params=pltpu.CompilerParams(
            dimension_semantics=("parallel", "arbitrary"),
            vmem_limit_bytes=vmem_limit),
    )(fm_flat, mask_flat, x_r, xtwm_bf16, bm, masks_bf16)
    # combine the per-core partial saliencies (race-free: disjoint output blocks)
    return jnp.sum(partial, axis=0)                           # (B, HW)


# ------------------------------- glue ---------------------------------------
def generate_masks(input_size, window_size, stride):
    """Port of SBSM.generate_masks (numpy, deterministic)."""
    H, W = input_size
    rows = np.arange(0 + stride - window_size, H, stride)
    cols = np.arange(0 + stride - window_size, W, stride)
    mask_num = len(rows) * len(cols)
    masks = np.ones((mask_num, H, W), dtype=np.uint8)
    i = 0
    for r in rows:
        for c in cols:
            r1, r2 = max(r, 0), min(r + window_size, H)
            c1, c2 = max(c, 0), min(c + window_size, W)
            masks[i, r1:r2, c1:c2] = 0
            i += 1
    return masks.reshape(-1, 1, H, W)


def extractor_feature_map(x_q, Wf, bf):
    # TODO(synk): the real `feature_module`/ModelOutputs is an arbitrary CNN;
    # synthesized here as a 1x1 conv, stride 2, + ReLU (NCHW).
    xs = x_q[:, :, ::2, ::2]                                       # (B, C, H/2, W/2)
    fm = jnp.einsum('dc,bchw->bdhw', Wf, xs) + bf[None, :, None, None]
    return jax.nn.relu(fm)


def sbsm_feature_mask_forward(x_q, x, mask, masks_u8, Wm, bm, Wf, bf, n_tile=16):
    B, C, H, W = x_q.shape
    D = Wm.shape[1]
    HW = H * W

    # extractor(x_q) -> A[-1]; bilinear upsample to input_size (plain-JAX glue,
    # matches F.interpolate(..., mode='bilinear', align_corners=False)).
    fm = extractor_feature_map(x_q, Wf, bf)                        # (B, D, H/2, W/2)
    fm = jax.image.resize(fm, (B, D, H, W), method='bilinear')     # (B, D, H, W)

    fm_flat = fm.reshape(B, D, HW).astype(jnp.float32)
    mask_flat = mask.reshape(B, HW).astype(jnp.float32)

    masks_f32 = jnp.asarray(masks_u8.reshape(-1, HW), jnp.float32)  # (N, HW)
    N = int(masks_u8.shape[0])

    # Fold the model linear weight into the reference image: x^T @ Wm -> (HW, D).
    x_flatT = x[0].reshape(C, HW).T.astype(jnp.float32)
    xtwm = x_flatT @ Wm                                            # (HW, D)
    x_r = jnp.mean(xtwm, axis=0, keepdims=True) + bm               # (1, D) == model(x)

    # count / inv_count precomputed (masks static per call); guard divide-by-zero
    # (pixels never zeroed by any sliding window would otherwise give inf/NaN).
    count = N - jnp.sum(masks_f32, axis=0, keepdims=True)          # (1, HW)
    inv_count = jnp.where(count > 0, 1.0 / count, 0.0)

    # Pad N up to a multiple of n_tile * NCORES with ALL-ONES mask rows.
    # All-ones rows are exact no-ops: (1 - ones) == 0, so rowsum(w) - w @ masks
    # cancels identically regardless of their w.
    Npad = -(-N // (n_tile * NCORES)) * (n_tile * NCORES)
    if Npad != N:
        masks_f32 = jnp.concatenate(
            [masks_f32, jnp.ones((Npad - N, HW), jnp.float32)], axis=0)

    # bf16 for the MXU-hot operands (masks are exactly representable 0/1 in bf16).
    masks_bf16 = masks_f32.astype(jnp.bfloat16)
    xtwm_bf16 = xtwm.astype(jnp.bfloat16)

    sal_flat = sbsm_feature_mask_pallas(fm_flat, mask_flat, x_r.astype(jnp.float32),
                                        xtwm_bf16, bm.astype(jnp.float32),
                                        masks_bf16, n_tile)
    sal_flat = sal_flat * inv_count                                # weighted_avg
    return sal_flat.reshape(B, H, W)


def _reference(fm_flat, mask_flat, masks_flat, x_flatT, Wm, bm):
    """Pure-JAX f32 reference of the same math (mirrors the PyTorch module)."""
    HW = x_flatT.shape[0]
    N = masks_flat.shape[0]
    num = jnp.sum(fm_flat * mask_flat[:, None, :], axis=-1)
    den = jnp.sum(mask_flat, axis=-1, keepdims=True)
    feats = num / den
    x_r = jnp.mean(x_flatT, axis=0, keepdims=True) @ Wm + bm
    emb = (masks_flat @ x_flatT / HW) @ Wm + bm
    o_dist = jnp.sqrt(jnp.sum((feats - x_r) ** 2, axis=-1, keepdims=True))
    m_dist = jnp.sqrt(jnp.sum((feats[:, None, :] - emb[None]) ** 2, axis=-1))
    w = jnp.maximum(m_dist - o_dist, 0.0)
    count = N - jnp.sum(masks_flat, axis=0, keepdims=True)
    return (w @ (1.0 - masks_flat)) / count


if __name__ == "__main__":
    B, C, H, W = 2, 3, 16, 16          # query batch, channels, spatial
    D = 8                              # model embedding / feature channels
    window_size, stride = 8, 4

    key = jax.random.PRNGKey(0)
    k1, k2, k3, k4, k5, k6 = jax.random.split(key, 6)

    x_q = jax.random.normal(k1, (B, C, H, W), jnp.float32)
    x = jax.random.normal(k2, (1, C, H, W), jnp.float32)   # single reference image
    # deterministic feature-pooling mask: a centered box of ones
    mask = jnp.zeros((B, 1, H, W), jnp.float32).at[:, :, 4:12, 4:12].set(1.0)

    # deterministic synthetic parameters (no checkpoint loading)
    Wm = 0.1 * jax.random.normal(k3, (C, D), jnp.float32)  # model linear weight
    bm = 0.1 * jax.random.normal(k4, (1, D), jnp.float32)  # model linear bias
    Wf = 0.1 * jax.random.normal(k5, (D, C), jnp.float32)  # 1x1 conv weight
    bf = 0.1 * jax.random.normal(k6, (D,), jnp.float32)    # 1x1 conv bias

    masks_u8 = generate_masks((H, W), window_size, stride)  # (N, 1, H, W), N = 25

    sal = sbsm_feature_mask_forward(x_q, x, mask, masks_u8, Wm, bm, Wf, bf)
    sal = jax.block_until_ready(sal)
    assert sal.shape == (B, H, W)

    # correctness check vs. pure-f32 reference of the same math
    # (tolerance loosened slightly for the bf16 MXU operands / approx reciprocal)
    fm = jax.image.resize(extractor_feature_map(x_q, Wf, bf), (B, D, H, W), 'bilinear')
    ref = _reference(fm.reshape(B, D, H * W),
                     mask.reshape(B, H * W),
                     jnp.asarray(masks_u8.reshape(-1, H * W), jnp.float32),
                     x[0].reshape(C, H * W).T, Wm, bm).reshape(B, H, W)
    np.testing.assert_allclose(np.asarray(sal), np.asarray(ref), rtol=2e-2, atol=1e-2)

    print("KERNEL_OK")
</pallas_src>

<mosaic_0001>
module attributes {stable_mosaic.version = 11 : i64} {
  func.func @_sbsm_feature_mask_kernel(%arg0: i32, %arg1: i32, %arg2: memref<2x8x256xf32, #tpu.memory_space<vmem>>, %arg3: memref<2x256xf32, #tpu.memory_space<vmem>>, %arg4: memref<1x8xf32, #tpu.memory_space<vmem>>, %arg5: memref<256x8xbf16, #tpu.memory_space<vmem>>, %arg6: memref<1x8xf32, #tpu.memory_space<vmem>>, %arg7: memref<16x256xbf16, #tpu.memory_space<vmem>>, %arg8: memref<1x2x256xf32, #tpu.memory_space<vmem>>, %arg9: memref<2x8xf32, #tpu.memory_space<vmem>>, %arg10: memref<2x1xf32, #tpu.memory_space<vmem>>) attributes {dimension_semantics = [#tpu.dimension_semantics<parallel>, #tpu.dimension_semantics<arbitrary>], iteration_bounds = array<i64: 2, 1>, scalar_prefetch = 0 : i64, scratch_operands = 2 : i64, tpu.core_type = #tpu.core_type<tc>, window_params = [{pipeline_mode = #tpu.pipeline_mode<synchronous>, transform_indices = @transform_0, window_bounds = array<i64: 2, 8, 256>}, {pipeline_mode = #tpu.pipeline_mode<synchronous>, transform_indices = @transform_1, window_bounds = array<i64: 2, 256>}, {pipeline_mode = #tpu.pipeline_mode<synchronous>, transform_indices = @transform_2, window_bounds = array<i64: 1, 8>}, {pipeline_mode = #tpu.pipeline_mode<synchronous>, transform_indices = @transform_3, window_bounds = array<i64: 256, 8>}, {pipeline_mode = #tpu.pipeline_mode<synchronous>, transform_indices = @transform_4, window_bounds = array<i64: 1, 8>}, {transform_indices = @transform_5, window_bounds = array<i64: 16, 256>}, {transform_indices = @transform_6, window_bounds = array<i64: 1, 2, 256>}]} {
    %c0_i32 = arith.constant 0 : i32
    %0 = arith.cmpi eq, %arg1, %c0_i32 : i32
    %1 = arith.extui %0 : i1 to i32
    %c0_i32_0 = arith.constant 0 : i32
    %2 = arith.cmpi ne, %1, %c0_i32_0 : i32
    scf.if %2 {
      %c0_21 = arith.constant 0 : index
      %c0_22 = arith.constant 0 : index
      %c0_23 = arith.constant 0 : index
      %37 = vector.load %arg2[%c0_21, %c0_22, %c0_23] : memref<2x8x256xf32, #tpu.memory_space<vmem>>, vector<2x8x256xf32>
      %c0_24 = arith.constant 0 : index
      %c0_25 = arith.constant 0 : index
      %38 = vector.load %arg3[%c0_24, %c0_25] : memref<2x256xf32, #tpu.memory_space<vmem>>, vector<2x256xf32>
      %39 = vector.shape_cast %38 : vector<2x256xf32> to vector<2x1x256xf32>
      %40 = vector.broadcast %39 : vector<2x1x256xf32> to vector<2x8x256xf32>
      %41 = arith.mulf %37, %40 : vector<2x8x256xf32>
      %cst_26 = arith.constant dense<0.000000e+00> : vector<2x8xf32>
      %42 = vector.multi_reduction <add>, %41, %cst_26 [2] : vector<2x8x256xf32> to vector<2x8xf32>
      %cst_27 = arith.constant dense<0.000000e+00> : vector<2xf32>
      %43 = vector.multi_reduction <add>, %38, %cst_27 [1] : vector<2x256xf32> to vector<2xf32>
      %44 = vector.shape_cast %43 : vector<2xf32> to vector<2x1xf32>
      %45 = tpu.reciprocal %44 {approx = true} : vector<2x1xf32> -> vector<2x1xf32>
      %46 = vector.broadcast %45 : vector<2x1xf32> to vector<2x8xf32>
      %47 = arith.mulf %42, %46 : vector<2x8xf32>
      %c0_28 = arith.constant 0 : index
      %c0_29 = arith.constant 0 : index
      %48 = vector.load %arg9[%c0_28, %c0_29] : memref<2x8xf32, #tpu.memory_space<vmem>>, vector<2x8xf32>
      tpu.vector_store %arg9[%c0_28, %c0_29], %47 {strides = array<i32>} : memref<2x8xf32, #tpu.memory_space<vmem>>, vector<2x8xf32>,
      %c0_30 = arith.constant 0 : index
      %c0_31 = arith.constant 0 : index
      %49 = vector.load %arg4[%c0_30, %c0_31] : memref<1x8xf32, #tpu.memory_space<vmem>>, vector<1x8xf32>
      %50 = vector.broadcast %49 : vector<1x8xf32> to vector<2x8xf32>
      %51 = arith.subf %47, %50 : vector<2x8xf32>
      %52 = arith.mulf %51, %51 : vector<2x8xf32>
      %cst_32 = arith.constant dense<0.000000e+00> : vector<2xf32>
      %53 = vector.multi_reduction <add>, %52, %cst_32 [1] : vector<2x8xf32> to vector<2xf32>
      %54 = vector.shape_cast %53 : vector<2xf32> to vector<2x1xf32>
      %55 = math.sqrt %54 : vector<2x1xf32>
      %c0_33 = arith.constant 0 : index
      %c0_34 = arith.constant 0 : index
      %56 = vector.load %arg10[%c0_33, %c0_34] : memref<2x1xf32, #tpu.memory_space<vmem>>, vector<2x1xf32>
      tpu.vector_store %arg10[%c0_33, %c0_34], %55 {strides = array<i32>} : memref<2x1xf32, #tpu.memory_space<vmem>>, vector<2x1xf32>,
      %cst_35 = arith.constant 0.000000e+00 : f32
      %57 = vector.broadcast %cst_35 : f32 to vector<2x256xf32>
      %c0_36 = arith.constant 0 : index
      %c0_37 = arith.constant 0 : index
      %c0_38 = arith.constant 0 : index
      %58 = vector.load %arg8[%c0_36, %c0_37, %c0_38] : memref<1x2x256xf32, #tpu.memory_space<vmem>>, vector<1x2x256xf32>
      %59 = vector.shape_cast %58 : vector<1x2x256xf32> to vector<2x256xf32>
      %60 = vector.shape_cast %57 : vector<2x256xf32> to vector<1x2x256xf32>
      tpu.vector_store %arg8[%c0_36, %c0_37, %c0_38], %60 {strides = array<i32>} : memref<1x2x256xf32, #tpu.memory_space<vmem>>, vector<1x2x256xf32>,
    } else {
    }
    %c0 = arith.constant 0 : index
    %c0_1 = arith.constant 0 : index
    %3 = vector.load %arg7[%c0, %c0_1] : memref<16x256xbf16, #tpu.memory_space<vmem>>, vector<16x256xbf16>
    %c0_2 = arith.constant 0 : index
    %c0_3 = arith.constant 0 : index
    %4 = vector.load %arg5[%c0_2, %c0_3] : memref<256x8xbf16, #tpu.memory_space<vmem>>, vector<256x8xbf16>
    %cst = arith.constant dense<0.000000e+00> : vector<16x8xf32>
    %5 = tpu.matmul %3, %4, %cst {dimension_numbers = #tpu.dot_dimension_numbers<[1], [0], [0], [1], [0, 0, 1, 1], [], []>} : vector<16x256xbf16>, vector<256x8xbf16>, vector<16x8xf32> -> vector<16x8xf32>
    %cst_4 = arith.constant 3.906250e-03 : f32
    %6 = vector.broadcast %cst_4 : f32 to vector<16x8xf32>
    %7 = arith.mulf %5, %6 : vector<16x8xf32>
    %c0_5 = arith.constant 0 : index
    %c0_6 = arith.constant 0 : index
    %8 = vector.load %arg6[%c0_5, %c0_6] : memref<1x8xf32, #tpu.memory_space<vmem>>, vector<1x8xf32>
    %9 = vector.broadcast %8 : vector<1x8xf32> to vector<16x8xf32>
    %10 = arith.addf %7, %9 : vector<16x8xf32>
    %c0_7 = arith.constant 0 : index
    %c0_8 = arith.constant 0 : index
    %11 = vector.load %arg9[%c0_7, %c0_8] : memref<2x8xf32, #tpu.memory_space<vmem>>, vector<2x8xf32>
    %c0_9 = arith.constant 0 : index
    %c0_10 = arith.constant 0 : index
    %12 = vector.load %arg10[%c0_9, %c0_10] : memref<2x1xf32, #tpu.memory_space<vmem>>, vector<2x1xf32>
    %13 = vector.shape_cast %11 : vector<2x8xf32> to vector<2x1x8xf32>
    %14 = vector.shape_cast %10 : vector<16x8xf32> to vector<1x16x8xf32>
    %15 = vector.broadcast %13 : vector<2x1x8xf32> to vector<2x16x8xf32>
    %16 = vector.broadcast %14 : vector<1x16x8xf32> to vector<2x16x8xf32>
    %17 = arith.subf %15, %16 : vector<2x16x8xf32>
    %18 = arith.mulf %17, %17 : vector<2x16x8xf32>
    %cst_11 = arith.constant dense<0.000000e+00> : vector<2x16xf32>
    %19 = vector.multi_reduction <add>, %18, %cst_11 [2] : vector<2x16x8xf32> to vector<2x16xf32>
    %20 = math.sqrt %19 : vector<2x16xf32>
    %21 = vector.broadcast %12 : vector<2x1xf32> to vector<2x16xf32>
    %22 = arith.subf %20, %21 : vector<2x16xf32>
    %cst_12 = arith.constant 0.000000e+00 : f32
    %23 = vector.broadcast %cst_12 : f32 to vector<2x16xf32>
    %24 = arith.maximumf %22, %23 : vector<2x16xf32>
    %cst_13 = arith.constant dense<0.000000e+00> : vector<2xf32>
    %25 = vector.multi_reduction <add>, %24, %cst_13 [1] : vector<2x16xf32> to vector<2xf32>
    %26 = vector.shape_cast %25 : vector<2xf32> to vector<2x1xf32>
    %27 = arith.truncf %24 : vector<2x16xf32> to vector<2x16xbf16>
    %cst_14 = arith.constant dense<0.000000e+00> : vector<2x256xf32>
    %28 = tpu.matmul %27, %3, %cst_14 {dimension_numbers = #tpu.dot_dimension_numbers<[1], [0], [0], [1], [0, 0, 1, 1], [], []>} : vector<2x16xbf16>, vector<16x256xbf16>, vector<2x256xf32> -> vector<2x256xf32>
    %c0_15 = arith.constant 0 : index
    %c0_16 = arith.constant 0 : index
    %c0_17 = arith.constant 0 : index
    %29 = vector.load %arg8[%c0_15, %c0_16, %c0_17] : memref<1x2x256xf32, #tpu.memory_space<vmem>>, vector<1x2x256xf32>
    %30 = vector.shape_cast %29 : vector<1x2x256xf32> to vector<2x256xf32>
    %31 = vector.broadcast %26 : vector<2x1xf32> to vector<2x256xf32>
    %32 = arith.subf %31, %28 : vector<2x256xf32>
    %33 = arith.addf %30, %32 : vector<2x256xf32>
    %c0_18 = arith.constant 0 : index
    %c0_19 = arith.constant 0 : index
    %c0_20 = arith.constant 0 : index
    %34 = vector.load %arg8[%c0_18, %c0_19, %c0_20] : memref<1x2x256xf32, #tpu.memory_space<vmem>>, vector<1x2x256xf32>
    %35 = vector.shape_cast %34 : vector<1x2x256xf32> to vector<2x256xf32>
    %36 = vector.shape_cast %33 : vector<2x256xf32> to vector<1x2x256xf32>
    tpu.vector_store %arg8[%c0_18, %c0_19, %c0_20], %36 {strides = array<i32>} : memref<1x2x256xf32, #tpu.memory_space<vmem>>, vector<1x2x256xf32>,
    return
  }
  func.func @transform_0(%arg0: i32, %arg1: i32) -> (i32, i32, i32) {
    %c0_i32 = arith.constant 0 : i32
    %c0_i32_0 = arith.constant 0 : i32
    %c0_i32_1 = arith.constant 0 : i32
    %c0_i32_2 = arith.constant 0 : i32
    return %c0_i32, %c0_i32_0, %c0_i32_1 : i32, i32, i32
  }
  func.func @transform_1(%arg0: i32, %arg1: i32) -> (i32, i32) {
    %c0_i32 = arith.constant 0 : i32
    %c0_i32_0 = arith.constant 0 : i32
    %c0_i32_1 = arith.constant 0 : i32
    return %c0_i32, %c0_i32_0 : i32, i32
  }
  func.func @transform_2(%arg0: i32, %arg1: i32) -> (i32, i32) {
    %c0_i32 = arith.constant 0 : i32
    %c0_i32_0 = arith.constant 0 : i32
    %c0_i32_1 = arith.constant 0 : i32
    return %c0_i32, %c0_i32_0 : i32, i32
  }
  func.func @transform_3(%arg0: i32, %arg1: i32) -> (i32, i32) {
    %c0_i32 = arith.constant 0 : i32
    %c0_i32_0 = arith.constant 0 : i32
    %c0_i32_1 = arith.constant 0 : i32
    return %c0_i32, %c0_i32_0 : i32, i32
  }
  func.func @transform_4(%arg0: i32, %arg1: i32) -> (i32, i32) {
    %c0_i32 = arith.constant 0 : i32
    %c0_i32_0 = arith.constant 0 : i32
    %c0_i32_1 = arith.constant 0 : i32
    return %c0_i32, %c0_i32_0 : i32, i32
  }
  func.func @transform_5(%arg0: i32, %arg1: i32) -> (i32, i32) {
    %c1_i32 = arith.constant 1 : i32
    %0 = arith.muli %arg0, %c1_i32 : i32
    %1 = arith.addi %0, %arg1 : i32
    %c0_i32 = arith.constant 0 : i32
    %c0_i32_0 = arith.constant 0 : i32
    return %1, %c0_i32 : i32, i32
  }
  func.func @transform_6(%arg0: i32, %arg1: i32) -> (i32, i32, i32) {
    %c0_i32 = arith.constant 0 : i32
    %c0_i32_0 = arith.constant 0 : i32
    %c0_i32_1 = arith.constant 0 : i32
    return %arg0, %c0_i32, %c0_i32_0 : i32, i32, i32
  }
}

</mosaic_0001>

<llo_original>
// kernel: tpu_custom_call.1
$region0: #{tpu_custom_call.1}
  #allocation0 [shape = 'u32[]', space=smem, size = 0x4, offset = 0x4, fixed_abs, tag = 'smem constant byte address 0x4 - core index']
  #allocation1 [shape = 'u32[72,128]{1,0:T(1,128)}', space=vmem, size = 0x9000, scoped, tag = 'internal scratch']
  #allocation2 [shape = 'f32[2,8]{1,0:T(2,128)}', space=vmem, size = 0x400, scoped, tag = 'scratch operand']
  #allocation3 [shape = 'f32[2,1]{1,0:T(2,128)}', space=vmem, size = 0x400, scoped, tag = 'scratch operand']
  %s0 = inlined_call_operand.vmem [shape: f32[2,8,256], index: 0, kind: input, shape index: {}]
  %s1 = inlined_call_operand.vmem [shape: f32[2,256], index: 1, kind: input, shape index: {}]
  %s2 = inlined_call_operand.vmem [shape: f32[1,8], index: 2, kind: input, shape index: {}]
  %s3 = inlined_call_operand.vmem [shape: bf16[256,8], index: 3, kind: input, shape index: {}]
  %s4 = inlined_call_operand.vmem [shape: f32[1,8], index: 4, kind: input, shape index: {}]
  %s5 = inlined_call_operand.vmem [shape: bf16[32,256], index: 5, kind: input, shape index: {}]
  %s6 = inlined_call_operand.hbm [shape: f32[2,2,256], index: 6, kind: output, shape index: {}]
  %s7 = sld [smem:[#allocation0]]
  $region61: #{tpu_custom_call.1} parent=0
    _
  %s9 = ssub.s32 1, %s7
  %s10 = scalar_select 0, %s9, %s7
  $region1: #{tpu_custom_call.1} parent=0
    #allocation4 [shape = 'u8[4096]{0}', space=vmem, size = 0x1000, scoped, tag = 'output window, operand 0']
    #allocation5 [shape = 's32[2]{0}', space=sflag, size = 0x8, scoped, tag = 'scoped memory for tpu_custom_call.1']
    %11 = vsyncpa [#allocation5], 0
    %s12 = scalar_lea.sflag [#allocation5], 1
    %13 = vsyncpa %s12, 0
    loop: start=0, step=1, limit=4
    $region2: #{tpu_custom_call.1} parent=1 // loop_pre_header
      _
    $region3: #{tpu_custom_call.1} parent=1 // loop_header
      %s15 = sphi 0, %s19
      %p16 = scmp.ge.s32.totalorder %s15, 4
      %s22 = sphi 0, %s34
      %s23 = sphi 0, %s30
      %s24 = sphi 0, %s22
      %s25 = sphi 0, %s23
      %s26 = sphi 0, %s24
      %s27 = sphi 0, %s25
      %s35 = sphi 0, %s35
      %s37 = sphi 0, %s35
      %s38 = sphi 0, %s37
      %s52 = sphi 0, %s38
      %s56 = sphi 0, %s56
      %s58 = sphi 0, %s56
      %s59 = sphi 0, %s58
      %s73 = sphi 0, %s59
      %s77 = sphi 0, %s77
      %s79 = sphi 0, %s77
      %s80 = sphi 0, %s79
      %s94 = sphi 0, %s80
      %s98 = sphi 0, %s98
      %s100 = sphi 0, %s98
      %s101 = sphi 0, %s100
      %s115 = sphi 0, %s101
      %s119 = sphi 0, %s119
      %s121 = sphi 0, %s119
      %s122 = sphi 0, %s121
      %s136 = sphi 0, %s122
      %s144 = sphi 0, %s146
      %s147 = sphi 0, %s144
      %s148 = sphi 0, %s147
      %s164 = sphi 0, %s148
      %s170 = sphi 0, %s172
      %s173 = sphi 0, %s170
      %s174 = sphi 0, %s173
      %s190 = sphi 0, %s174
    $region4: #{tpu_custom_call.1} parent=1 // loop_header_branch
      %18 = sbr.rel (%p16) target = $region8
    $region5: #{tpu_custom_call.1} parent=1 // loop_body
      %s20 = ssub.s32 %s15, 1
      %s21 = ssub.s32 %s15, 2
      %s28 = sadd.s32 1, %s23
      %p29 = scmp.ge.s32.totalorder %s28, 1
      %s30 = scalar_select %p29, 0, %s28
      %s31 = sadd.s32 1, %s22
      %s32 = scalar_select %p29, %s31, %s22
      %p33 = scmp.ge.s32.totalorder %s32, 2
      %s34 = scalar_select %p33, 0, %s32
      %s36 = sadd.s32 %s35, 1
      %p39 = scmp.eq.s32.totalorder %s15, 1
      %p40 = scmp.ne.s32.totalorder %s35, %s37
      %p41 = scmp.eq.s32.totalorder %s15, 0
      %p42 = por %p40, %p41
      %p43 = scmp.ne.s32.totalorder %s35, %s37
      %p44 = scmp.eq.s32.totalorder %s20, 1
      %p45 = por %p43, %p44
      %p46 = scmp.ne.s32.totalorder %s37, %s38
      %p47 = scmp.eq.s32.totalorder %s20, 0
      %p48 = por %p46, %p47
      %p49 = scmp.ne.s32.totalorder %s37, %s38
      %p50 = scmp.eq.s32.totalorder %s21, 1
      %p51 = por %p49, %p50
      %p53 = scmp.ne.s32.totalorder %s38, %s52
      %p54 = scmp.eq.s32.totalorder %s21, 0
      %p55 = por %p53, %p54
      %s57 = sadd.s32 %s56, 1
      %p60 = scmp.eq.s32.totalorder %s15, 1
      %p61 = scmp.ne.s32.totalorder %s56, %s58
      %p62 = scmp.eq.s32.totalorder %s15, 0
      %p63 = por %p61, %p62
      %p64 = scmp.ne.s32.totalorder %s56, %s58
      %p65 = scmp.eq.s32.totalorder %s20, 1
      %p66 = por %p64, %p65
      %p67 = scmp.ne.s32.totalorder %s58, %s59
      %p68 = scmp.eq.s32.totalorder %s20, 0
      %p69 = por %p67, %p68
      %p70 = scmp.ne.s32.totalorder %s58, %s59
      %p71 = scmp.eq.s32.totalorder %s21, 1
      %p72 = por %p70, %p71
      %p74 = scmp.ne.s32.totalorder %s59, %s73
      %p75 = scmp.eq.s32.totalorder %s21, 0
      %p76 = por %p74, %p75
      %s78 = sadd.s32 %s77, 1
      %p81 = scmp.eq.s32.totalorder %s15, 1
      %p82 = scmp.ne.s32.totalorder %s77, %s79
      %p83 = scmp.eq.s32.totalorder %s15, 0
      %p84 = por %p82, %p83
      %p85 = scmp.ne.s32.totalorder %s77, %s79
      %p86 = scmp.eq.s32.totalorder %s20, 1
      %p87 = por %p85, %p86
      %p88 = scmp.ne.s32.totalorder %s79, %s80
      %p89 = scmp.eq.s32.totalorder %s20, 0
      %p90 = por %p88, %p89
      %p91 = scmp.ne.s32.totalorder %s79, %s80
      %p92 = scmp.eq.s32.totalorder %s21, 1
      %p93 = por %p91, %p92
      %p95 = scmp.ne.s32.totalorder %s80, %s94
      %p96 = scmp.eq.s32.totalorder %s21, 0
      %p97 = por %p95, %p96
      %s99 = sadd.s32 %s98, 1
      %p102 = scmp.eq.s32.totalorder %s15, 1
      %p103 = scmp.ne.s32.totalorder %s98, %s100
      %p104 = scmp.eq.s32.totalorder %s15, 0
      %p105 = por %p103, %p104
      %p106 = scmp.ne.s32.totalorder %s98, %s100
      %p107 = scmp.eq.s32.totalorder %s20, 1
      %p108 = por %p106, %p107
      %p109 = scmp.ne.s32.totalorder %s100, %s101
      %p110 = scmp.eq.s32.totalorder %s20, 0
      %p111 = por %p109, %p110
      %p112 = scmp.ne.s32.totalorder %s100, %s101
      %p113 = scmp.eq.s32.totalorder %s21, 1
      %p114 = por %p112, %p113
      %p116 = scmp.ne.s32.totalorder %s101, %s115
      %p117 = scmp.eq.s32.totalorder %s21, 0
      %p118 = por %p116, %p117
      %s120 = sadd.s32 %s119, 1
      %p123 = scmp.eq.s32.totalorder %s15, 1
      %p124 = scmp.ne.s32.totalorder %s119, %s121
      %p125 = scmp.eq.s32.totalorder %s15, 0
      %p126 = por %p124, %p125
      %p127 = scmp.ne.s32.totalorder %s119, %s121
      %p128 = scmp.eq.s32.totalorder %s20, 1
      %p129 = por %p127, %p128
      %p130 = scmp.ne.s32.totalorder %s121, %s122
      %p131 = scmp.eq.s32.totalorder %s20, 0
      %p132 = por %p130, %p131
      %p133 = scmp.ne.s32.totalorder %s121, %s122
      %p134 = scmp.eq.s32.totalorder %s21, 1
      %p135 = por %p133, %p134
      %p137 = scmp.ne.s32.totalorder %s122, %s136
      %p138 = scmp.eq.s32.totalorder %s21, 0
      %p139 = por %p137, %p138
      %s140 = sadd.s32 %s22, %s23
      %s141 = sadd.s32 %s34, %s30
      %s142 = ssub.s32 %s140, %s141
      %p143 = scmp.eq.s32.totalorder %s142, 0
      %s145 = sadd.s32 %s144, 1
      %s146 = scalar_select %p143, %s144, %s145
      %p149 = pneg %p143
      %p150 = scmp.eq.s32.totalorder %s15, 1
      %p151 = por %p149, %p150
      %p152 = scmp.ne.s32.totalorder %s144, %s147
      %p153 = scmp.eq.s32.totalorder %s15, 0
      %p154 = por %p152, %p153
      %p155 = scmp.ne.s32.totalorder %s144, %s147
      %p156 = scmp.eq.s32.totalorder %s20, 1
      %p157 = por %p155, %p156
      %p158 = scmp.ne.s32.totalorder %s147, %s148
      %p159 = scmp.eq.s32.totalorder %s20, 0
      %p160 = por %p158, %p159
      %p161 = scmp.ne.s32.totalorder %s147, %s148
      %p162 = scmp.eq.s32.totalorder %s21, 1
      %p163 = por %p161, %p162
      %p165 = scmp.ne.s32.totalorder %s148, %s164
      %p166 = scmp.eq.s32.totalorder %s21, 0
      %p167 = por %p165, %p166
      %s168 = ssub.s32 %s22, %s34
      %p169 = scmp.eq.s32.totalorder %s168, 0
      %s171 = sadd.s32 %s170, 1
      %s172 = scalar_select %p169, %s170, %s171
      %p175 = pneg %p169
      %p176 = scmp.eq.s32.totalorder %s15, 1
      %p177 = por %p175, %p176
      %p178 = scmp.ne.s32.totalorder %s170, %s173
      %p179 = scmp.eq.s32.totalorder %s15, 0
      %p180 = por %p178, %p179
      %p181 = scmp.ne.s32.totalorder %s170, %s173
      %p182 = scmp.eq.s32.totalorder %s20, 1
      %p183 = por %p181, %p182
      %p184 = scmp.ne.s32.totalorder %s173, %s174
      %p185 = scmp.eq.s32.totalorder %s20, 0
      %p186 = por %p184, %p185
      %p187 = scmp.ne.s32.totalorder %s173, %s174
      %p188 = scmp.eq.s32.totalorder %s21, 1
      %p189 = por %p187, %p188
      %p191 = scmp.ne.s32.totalorder %s174, %s190
      %p192 = scmp.eq.s32.totalorder %s21, 0
      %p193 = por %p191, %p192
      %p194 = scmp.le.s32.totalorder 1, %s15
      %p195 = scmp.lt.s32.totalorder %s15, 3
      %p196 = pnand %p194, %p195
      %p197 = pneg %p196
      // Predicated region
      $region9: #{tpu_custom_call.1} parent=5 // pred_check
        _
      $region10: #{tpu_custom_call.1} parent=5 // pred_check_branch
        %199 = sbr.rel (%p196) target = $region12
      $region11: #{tpu_custom_call.1} parent=5 // pred_region
        %s200 = ssub.s32 %s15, 1
        // Predicated region
        $region13: #{tpu_custom_call.1} parent=11 // pred_check
          %p201 = pneg %p48
        $region14: #{tpu_custom_call.1} parent=11 // pred_check_branch
          %203 = sbr.rel (%p201) target = $region16
        $region15: #{tpu_custom_call.1} parent=11 // pred_region
          _
        $region16: #{tpu_custom_call.1} parent=11 // pred_fallthru
          _
        // Predicated region
        $region17: #{tpu_custom_call.1} parent=11 // pred_check
          %p204 = pneg %p69
        $region18: #{tpu_custom_call.1} parent=11 // pred_check_branch
          %206 = sbr.rel (%p204) target = $region20
        $region19: #{tpu_custom_call.1} parent=11 // pred_region
          _
        $region20: #{tpu_custom_call.1} parent=11 // pred_fallthru
          _
        // Predicated region
        $region21: #{tpu_custom_call.1} parent=11 // pred_check
          %p207 = pneg %p90
        $region22: #{tpu_custom_call.1} parent=11 // pred_check_branch
          %209 = sbr.rel (%p207) target = $region24
        $region23: #{tpu_custom_call.1} parent=11 // pred_region
          _
        $region24: #{tpu_custom_call.1} parent=11 // pred_fallthru
          _
        // Predicated region
        $region25: #{tpu_custom_call.1} parent=11 // pred_check
          %p210 = pneg %p111
        $region26: #{tpu_custom_call.1} parent=11 // pred_check_branch
          %212 = sbr.rel (%p210) target = $region28
        $region27: #{tpu_custom_call.1} parent=11 // pred_region
          _
        $region28: #{tpu_custom_call.1} parent=11 // pred_fallthru
          _
        // Predicated region
        $region29: #{tpu_custom_call.1} parent=11 // pred_check
          %p213 = pneg %p132
        $region30: #{tpu_custom_call.1} parent=11 // pred_check_branch
          %215 = sbr.rel (%p213) target = $region32
        $region31: #{tpu_custom_call.1} parent=11 // pred_region
          _
        $region32: #{tpu_custom_call.1} parent=11 // pred_fallthru
          _
      $region12: #{tpu_custom_call.1} parent=5 // pred_fallthru
        _
      %p216 = scmp.lt.s32.totalorder %s15, 2
      // Predicated region
      $region33: #{tpu_custom_call.1} parent=5 // pred_check
        %p217 = pneg %p216
      $region34: #{tpu_custom_call.1} parent=5 // pred_check_branch
        %219 = sbr.rel (%p217) target = $region36
      $region35: #{tpu_custom_call.1} parent=5 // pred_region
        // Predicated region
        $region37: #{tpu_custom_call.1} parent=35 // pred_check
          %p220 = pneg %p154
        $region38: #{tpu_custom_call.1} parent=35 // pred_check_branch
          %222 = sbr.rel (%p220) target = $region40
        $region39: #{tpu_custom_call.1} parent=35 // pred_region
          %s223 = sadd.s32 %s22, %s23
          %s224 = smul.u32 2, %s223
          %p225 = scmp.lt.s32.totalorder %s224, 3
          %s226 = scalar_select %p225, %s224, 3
          %s227 = smul.addr %s226, 2
          %s228 = smul.addr %s227, 4
          %s229 = scalar_lea.vmem %s5, %s228
          %s230 = sadd.s32 %s22, %s23
          %s231 = smul.u32 2, %s230
        $region40: #{tpu_custom_call.1} parent=35 // pred_fallthru
          _
      $region36: #{tpu_custom_call.1} parent=5 // pred_fallthru
        _
      %p232 = scmp.le.s32.totalorder 1, %s15
      %p233 = scmp.lt.s32.totalorder %s15, 3
      %p234 = pnand %p232, %p233
      %p235 = pneg %p234
      // Predicated region
      $region41: #{tpu_custom_call.1} parent=5 // pred_check
        _
      $region42: #{tpu_custom_call.1} parent=5 // pred_check_branch
        %237 = sbr.rel (%p234) target = $region44
      $region43: #{tpu_custom_call.1} parent=5 // pred_region
        %s238 = ssub.s32 %s15, 1
        %p239 = pneg %p48
        %p240 = pneg %p45
        %p241 = pneg %p69
        %p242 = pneg %p66
        %p243 = pneg %p90
        %p244 = pneg %p87
        %p245 = pneg %p111
        %p246 = pneg %p108
        %p247 = pneg %p132
        %p248 = pneg %p129
        %s249 = sadd.s32 %s24, %s25
        %s250 = smul.u32 2, %s249
        %p251 = scmp.lt.s32.totalorder %s250, 3
        %s252 = scalar_select %p251, %s250, 3
        %s253 = smul.addr %s252, 2
        %s254 = smul.addr %s253, 4
        %s255 = scalar_lea.vmem %s5, %s254
        %p256 = pneg %p160
        %p257 = pneg %p157
        %p258 = pneg %p186
        %p259 = pneg %p183
        %s260 = sand.u32 %s173, 1
        %s261 = scalar_lea.sflag [#allocation5], %s260
        %s262 = sand.u32 %s173, 1
        %s263 = smul.addr %s262, 4
        %s264 = scalar_lea.vmem [#allocation4], %s263
        %s265 = sadd.s32 %s24, %s25
        %s266 = smul.u32 2, %s265
        %p267 = scmp.lt.s32.totalorder %s266, 3
        %s268 = scalar_select %p267, %s266, 3
        %s269 = smul.addr %s268, 2
        %s270 = smul.addr %s269, 4
        %s271 = scalar_lea.vmem %s5, %s270
        %s272 = sadd.s32 %s24, %s25
        %s273 = smul.u32 2, %s272
        %p275 = scmp.eq.s32.totalorder %s25, 0
        // Predicated region
        $region45: #{tpu_custom_call.1} parent=43 // pred_check
          %p276 = pneg %p275
        $region46: #{tpu_custom_call.1} parent=43 // pred_check_branch
          %278 = sbr.rel (%p276) target = $region48
        $region47: #{tpu_custom_call.1} parent=43 // pred_region
          %v279 = vld [vmem:[%s0] sm:$0xff]
          %v280 = vld [vmem:[%s0 + $0x8] sm:$0xff]
          %v281 = vld [vmem:[%s0 + $0x10] sm:$0xff]
          %v282 = vld [vmem:[%s0 + $0x18] sm:$0xff]
          %v283 = vld [vmem:[%s1] sm:$0xf]
          %v285 = vrot.slane %v283, 1
          %v286 = vrot.slane %v283, 2
          %v287 = vrot.slane %v283, 3
          %vm288 = vcmask 1040384
          %v289 = vsel %vm288, %v283, %v285
          %vm290 = vcmask 1042434
          %v291 = vsel %vm290, %v286, %v287
          %vm292 = vcmask 1041408
          %v293 = vsel %vm292, %v289, %v291
          %vm294 = vcmask 1041409
          %v295 = vsel %vm294, %v283, %v285
          %vm296 = vcmask 1043459
          %v297 = vsel %vm296, %v286, %v287
          %vm298 = vcmask 1042433
          %v299 = vsel %vm298, %v295, %v297
          %v300 = vrot.slane %v299, 1
          %v301 = vperm.slane %v293, 0
          %v302 = vperm.slane %v293, 1
          %v303 = vperm.slane %v300, 0
          %v304 = vperm.slane %v300, 1
          %v309 = vmul.f32 %v279, %v301
          %v310 = vmul.f32 %v280, %v302
          %v311 = vmul.f32 %v281, %v303
          %v312 = vmul.f32 %v282, %v304
          %v313 = vadd.f32 %v309, %v310
          %314 = vadd.xlane.f32.xlu0 %v313
          %v315 = vpop.xlane.xlu0 %314
          %v316 = vadd.f32 %v311, %v312
          %317 = vadd.xlane.f32.xlu0 %v316
          %v318 = vpop.xlane.xlu0 %317
          %319 = vst [vmem:[#allocation1] ss:$4 sm:$0xff] %v283
          %v320 = vld.sshfl [vmem:[#allocation1] sm:$0xff pattern:$0x73625140]
          %v321 = vld.sshfl [vmem:[#allocation1 + $0x8] sm:$0xff pattern:$0x73625140]
          %v324 = vsel %vm292, %v320, 0.0
          %v325 = vsel %vm292, %v321, 0.0
          %v326 = vadd.f32 %v324, %v325
          %327 = vadd.xlane.f32.xlu0 %v326
          %v328 = vpop.xlane.xlu0 %327
          %v329 = vrcp.pop %v328
          %v331 = vperm.slane %v329, 0
          %v332 = vperm.slane %v329, 1
          %v335 = vmul.f32 %v315, %v331
          %v336 = vmul.f32 %v318, %v332
          %339 = vset.pattern.permute.xlu0 0
          %340 = vperm.xlu0 %339, %v335
          %v341 = vpop.permute.xlu0 %340
          %342 = vset.pattern.permute.xlu0 0
          %343 = vperm.xlu0 %342, %v336
          %v344 = vpop.permute.xlu0 %343
          %v345 = vlaneseq
          %v346 = vand.u32 %v345, 127
          %v347 = vperm.slane %v341, %v346
          %v348 = vperm.slane %v344, %v346
          %v349 = vsel %vm294, %v348, %v347
          %vm351 = vcmask 58368
          %352 = vst.msk [vmem:[#allocation2] sm:$0x3] %vm351, %v349
          %v353 = vld [vmem:[%s2] sm:$0x1]
          %v355 = vperm.slane %v353, 0
          %v356 = vlaneseq
          %v357 = vshrl.u32 %v356, 7
          %359 = vset.pattern.permute.xlu0 %v357
          %360 = vperm.xlu0 %359, %v355
          %v361 = vpop.permute.xlu0 %360
          %v363 = vsub.f32 %v335, %v361
          %v364 = vsub.f32 %v336, %v361
          %v365 = vmul.f32 %v363, %v363
          %v366 = vmul.f32 %v364, %v364
          %369 = vset.pattern.permute.xlu0 0
          %370 = vperm.xlu0 %369, %v365
          %v371 = vpop.permute.xlu0 %370
          %372 = vset.pattern.permute.xlu0 0
          %373 = vperm.xlu0 %372, %v366
          %v374 = vpop.permute.xlu0 %373
          %v375 = vperm.slane %v371, %v346
          %v376 = vperm.slane %v374, %v346
          %v377 = vsel %vm294, %v376, %v375
          %v379 = vsel %vm351, %v377, 0.0
          %380 = vadd.xlane.f32.xlu0 %v379
          %v381 = vpop.xlane.xlu0 %380
          %v382 = vrsqrt.pop %v381
          %v383 = vmul.f32 %v382, %v381
          %v384 = vmul.f32 %v383, %v382
          %v385 = vmul.f32 0.5, %v384
          %v386 = vsub.f32 1.5, %v385
          %v387 = vmul.f32 %v382, %v386
          %v388 = vmul.f32 %v381, %v387
          %vm389 = vcmp.eq.f32.partialorder %v381, inf
          %v390 = vsel %vm389, %v381, %v388
          %vm391 = vcmp.eq.f32.partialorder %v381, 0.0
          %v392 = vand.u32 %v381, 2147483648
          %v393 = vsel %vm391, %v392, %v390
          %vm394 = vcmask 1024
          %395 = vst.msk [vmem:[#allocation3] sm:$0x3] %vm394, %v393
          %396 = vst [vmem:[%s264] sm:$0xf] 0.0
        $region48: #{tpu_custom_call.1} parent=43 // pred_fallthru
          _
        %v397 = vld [vmem:[%s271] sm:$0xff]
        %v398 = vld [vmem:[%s271 + $0x8] sm:$0xff]
        %v399 = vld [vmem:[%s3] sm:$0xf]
        %v400 = vld [vmem:[%s3 + $0x4] sm:$0xf]
        %v401 = vld [vmem:[%s3 + $0x8] sm:$0xf]
        %v402 = vld [vmem:[%s3 + $0xc] sm:$0xf]
        %v403 = vld [vmem:[%s3 + $0x10] sm:$0xf]
        %v404 = vld [vmem:[%s3 + $0x14] sm:$0xf]
        %v405 = vld [vmem:[%s3 + $0x18] sm:$0xf]
        %v406 = vld [vmem:[%s3 + $0x1c] sm:$0xf]
        %v407 = vld [vmem:[%s3 + $0x20] sm:$0xf]
        %v408 = vld [vmem:[%s3 + $0x24] sm:$0xf]
        %v409 = vld [vmem:[%s3 + $0x28] sm:$0xf]
        %v410 = vld [vmem:[%s3 + $0x2c] sm:$0xf]
        %v411 = vld [vmem:[%s3 + $0x30] sm:$0xf]
        %v412 = vld [vmem:[%s3 + $0x34] sm:$0xf]
        %v413 = vld [vmem:[%s3 + $0x38] sm:$0xf]
        %v414 = vld [vmem:[%s3 + $0x3c] sm:$0xf]
        %v415 = vld [vmem:[%s3 + $0x40] sm:$0xf]
        %v416 = vld [vmem:[%s3 + $0x44] sm:$0xf]
        %v417 = vld [vmem:[%s3 + $0x48] sm:$0xf]
        %v418 = vld [vmem:[%s3 + $0x4c] sm:$0xf]
        %v419 = vld [vmem:[%s3 + $0x50] sm:$0xf]
        %v420 = vld [vmem:[%s3 + $0x54] sm:$0xf]
        %v421 = vld [vmem:[%s3 + $0x58] sm:$0xf]
        %v422 = vld [vmem:[%s3 + $0x5c] sm:$0xf]
        %v423 = vld [vmem:[%s3 + $0x60] sm:$0xf]
        %v424 = vld [vmem:[%s3 + $0x64] sm:$0xf]
        %v425 = vld [vmem:[%s3 + $0x68] sm:$0xf]
        %v426 = vld [vmem:[%s3 + $0x6c] sm:$0xf]
        %v427 = vld [vmem:[%s3 + $0x70] sm:$0xf]
        %v428 = vld [vmem:[%s3 + $0x74] sm:$0xf]
        %v429 = vld [vmem:[%s3 + $0x78] sm:$0xf]
        %v430 = vld [vmem:[%s3 + $0x7c] sm:$0xf]
        %v433 = vunpack.c.l.b16 %v397
        %v434 = vunpack.c.h.b16 %v397
        %v435 = vunpack.c.l.b16 %v398
        %v436 = vunpack.c.h.b16 %v398
        %v437 = vpack.c.b16 %v435, %v433
        %v438 = vpack.c.b16 %v436, %v434
        %v473 = vunpack.c.l.b16 %v399
        %v474 = vunpack.c.l.b16 %v400
        %v475 = vunpack.c.l.b16 %v401
        %v476 = vunpack.c.l.b16 %v402
        %v477 = vunpack.c.l.b16 %v403
        %v478 = vunpack.c.l.b16 %v404
        %v479 = vunpack.c.l.b16 %v405
        %v480 = vunpack.c.l.b16 %v406
        %v481 = vunpack.c.l.b16 %v407
        %v482 = vunpack.c.l.b16 %v408
        %v483 = vunpack.c.l.b16 %v409
        %v484 = vunpack.c.l.b16 %v410
        %v485 = vunpack.c.l.b16 %v411
        %v486 = vunpack.c.l.b16 %v412
        %v487 = vunpack.c.l.b16 %v413
        %v488 = vunpack.c.l.b16 %v414
        %v489 = vunpack.c.l.b16 %v415
        %v490 = vunpack.c.l.b16 %v416
        %v491 = vunpack.c.l.b16 %v417
        %v492 = vunpack.c.l.b16 %v418
        %v493 = vunpack.c.l.b16 %v419
        %v494 = vunpack.c.l.b16 %v420
        %v495 = vunpack.c.l.b16 %v421
        %v496 = vunpack.c.l.b16 %v422
        %v497 = vunpack.c.l.b16 %v423
        %v498 = vunpack.c.l.b16 %v424
        %v499 = vunpack.c.l.b16 %v425
        %v500 = vunpack.c.l.b16 %v426
        %v501 = vunpack.c.l.b16 %v427
        %v502 = vunpack.c.l.b16 %v428
        %v503 = vunpack.c.l.b16 %v429
        %v504 = vunpack.c.l.b16 %v430
        %v505 = vpack.c.b16 %v474, %v473
        %v506 = vpack.c.b16 %v476, %v475
        %v507 = vpack.c.b16 %v478, %v477
        %v508 = vpack.c.b16 %v480, %v479
        %v509 = vpack.c.b16 %v482, %v481
        %v510 = vpack.c.b16 %v484, %v483
        %v511 = vpack.c.b16 %v486, %v485
        %v512 = vpack.c.b16 %v488, %v487
        %v513 = vpack.c.b16 %v490, %v489
        %v514 = vpack.c.b16 %v492, %v491
        %v515 = vpack.c.b16 %v494, %v493
        %v516 = vpack.c.b16 %v496, %v495
        %v517 = vpack.c.b16 %v498, %v497
        %v518 = vpack.c.b16 %v500, %v499
        %v519 = vpack.c.b16 %v502, %v501
        %v520 = vpack.c.b16 %v504, %v503
        %537 = vmatpush.bf16.msra.mxu0 %v512
        %538 = vmatpush.bf16.msra.mxu0 %v511
        %539 = vmatpush.bf16.msra.mxu0 %v510
        %540 = vmatpush.bf16.msra.mxu0 %v509
        %541 = vmatpush.bf16.msra.mxu0 %v508
        %542 = vmatpush.bf16.msra.mxu0 %v507
        %543 = vmatpush.bf16.msra.mxu0 %v506
        %544 = vmatpush.bf16.msra.mxu0 %v505
        %545 = vmatmul.bf16.gmra.mxu0 %v437
        %v546 = vpop.f32.mrf.mxu0
        %v547 = vadd.f32 0.0, %v546
        %v548 = vpop.f32.mrf.mxu0
        %v549 = vadd.f32 0.0, %v548
        %550 = vdwg.mxu0
        %551 = vmatpush.bf16.msra.mxu0 %v520
        %552 = vmatpush.bf16.msra.mxu0 %v519
        %553 = vmatpush.bf16.msra.mxu0 %v518
        %554 = vmatpush.bf16.msra.mxu0 %v517
        %555 = vmatpush.bf16.msra.mxu0 %v516
        %556 = vmatpush.bf16.msra.mxu0 %v515
        %557 = vmatpush.bf16.msra.mxu0 %v514
        %558 = vmatpush.bf16.msra.mxu0 %v513
        %559 = vmatmul.bf16.gmra.mxu0 %v438
        %v560 = vpop.f32.mrf.mxu0
        %v561 = vadd.f32 %v547, %v560
        %v562 = vpop.f32.mrf.mxu0
        %v563 = vadd.f32 %v549, %v562
        %564 = vdwg.mxu0
        %v565 = vmul.f32 %v561, 0.00390625
        %v566 = vmul.f32 %v563, 0.00390625
        %v567 = vld [vmem:[%s4] sm:$0x1]
        %v569 = vperm.slane %v567, 0
        %v571 = vadd.f32 %v565, %v569
        %v572 = vadd.f32 %v566, %v569
        %v573 = vld [vmem:[#allocation2] sm:$0x3]
        %v574 = vld [vmem:[#allocation3] sm:$0x3]
        %v576 = vrot.slane %v573, 1
        %v577 = vperm.slane %v573, 0
        %v578 = vperm.slane %v576, 0
        %v581 = vsub.f32 %v577, %v571
        %v582 = vsub.f32 %v577, %v572
        %v583 = vsub.f32 %v578, %v571
        %v584 = vsub.f32 %v578, %v572
        %v585 = vmul.f32 %v581, %v581
        %v586 = vmul.f32 %v582, %v582
        %v587 = vmul.f32 %v583, %v583
        %v588 = vmul.f32 %v584, %v584
        %vm589 = vcmask 64512
        %v590 = vsel %vm589, %v585, 0.0
        %591 = vadd.xlane.f32.xlu0 %v590
        %v592 = vpop.xlane.xlu0 %591
        %v593 = vsel %vm589, %v586, 0.0
        %594 = vadd.xlane.f32.xlu0 %v593
        %v595 = vpop.xlane.xlu0 %594
        %v596 = vsel %vm589, %v587, 0.0
        %597 = vadd.xlane.f32.xlu0 %v596
        %v598 = vpop.xlane.xlu0 %597
        %v599 = vsel %vm589, %v588, 0.0
        %600 = vadd.xlane.f32.xlu0 %v599
        %v601 = vpop.xlane.xlu0 %600
        %v602 = vrsqrt.pop %v592
        %v603 = vmul.f32 %v602, %v592
        %v604 = vmul.f32 %v603, %v602
        %v605 = vmul.f32 0.5, %v604
        %v606 = vsub.f32 1.5, %v605
        %v607 = vmul.f32 %v602, %v606
        %v608 = vmul.f32 %v592, %v607
        %vm609 = vcmp.eq.f32.partialorder %v592, inf
        %v610 = vsel %vm609, %v592, %v608
        %vm611 = vcmp.eq.f32.partialorder %v592, 0.0
        %v612 = vand.u32 %v592, 2147483648
        %v613 = vsel %vm611, %v612, %v610
        %v614 = vrsqrt.pop %v595
        %v615 = vmul.f32 %v614, %v595
        %v616 = vmul.f32 %v615, %v614
        %v617 = vmul.f32 0.5, %v616
        %v618 = vsub.f32 1.5, %v617
        %v619 = vmul.f32 %v614, %v618
        %v620 = vmul.f32 %v595, %v619
        %vm621 = vcmp.eq.f32.partialorder %v595, inf
        %v622 = vsel %vm621, %v595, %v620
        %vm623 = vcmp.eq.f32.partialorder %v595, 0.0
        %v624 = vand.u32 %v595, 2147483648
        %v625 = vsel %vm623, %v624, %v622
        %v626 = vrsqrt.pop %v598
        %v627 = vmul.f32 %v626, %v598
        %v628 = vmul.f32 %v627, %v626
        %v629 = vmul.f32 0.5, %v628
        %v630 = vsub.f32 1.5, %v629
        %v631 = vmul.f32 %v626, %v630
        %v632 = vmul.f32 %v598, %v631
        %vm633 = vcmp.eq.f32.partialorder %v598, inf
        %v634 = vsel %vm633, %v598, %v632
        %vm635 = vcmp.eq.f32.partialorder %v598, 0.0
        %v636 = vand.u32 %v598, 2147483648
        %v637 = vsel %vm635, %v636, %v634
        %v638 = vrsqrt.pop %v601
        %v639 = vmul.f32 %v638, %v601
        %v640 = vmul.f32 %v639, %v638
        %v641 = vmul.f32 0.5, %v640
        %v642 = vsub.f32 1.5, %v641
        %v643 = vmul.f32 %v638, %v642
        %v644 = vmul.f32 %v601, %v643
        %vm645 = vcmp.eq.f32.partialorder %v601, inf
        %v646 = vsel %vm645, %v601, %v644
        %vm647 = vcmp.eq.f32.partialorder %v601, 0.0
        %v648 = vand.u32 %v601, 2147483648
        %v649 = vsel %vm647, %v648, %v646
        %651 = vset.pattern.permute.xlu0 0
        %652 = vperm.xlu0 %651, %v574
        %v653 = vpop.permute.xlu0 %652
        %v654 = vperm.slane %v653, 0
        %v655 = vperm.slane %v653, 1
        %v658 = vsub.f32 %v613, %v654
        %v659 = vsub.f32 %v625, %v654
        %v660 = vsub.f32 %v637, %v655
        %v661 = vsub.f32 %v649, %v655
        %v662 = vmax.f32 %v658, 0.0
        %v663 = vmax.f32 %v659, 0.0
        %v664 = vmax.f32 %v660, 0.0
        %v665 = vmax.f32 %v661, 0.0
        %670 = vset.pattern.permute.xlu0 0
        %671 = vperm.xlu0 %670, %v662
        %v672 = vpop.permute.xlu0 %671
        %673 = vset.pattern.permute.xlu0 0
        %674 = vperm.xlu0 %673, %v663
        %v675 = vpop.permute.xlu0 %674
        %676 = vset.pattern.permute.xlu0 0
        %677 = vperm.xlu0 %676, %v664
        %v678 = vpop.permute.xlu0 %677
        %679 = vset.pattern.permute.xlu0 0
        %680 = vperm.xlu0 %679, %v665
        %v681 = vpop.permute.xlu0 %680
        %v682 = vlaneseq
        %v683 = vand.u32 %v682, 127
        %v684 = vperm.slane %v672, %v683
        %v685 = vadd.s32 %v683, 4294967288
        %v686 = vperm.slane %v675, %v685
        %vm687 = vcmask 130112
        %v688 = vsel %vm687, %v686, %v684
        %v689 = vperm.slane %v678, %v683
        %v690 = vperm.slane %v681, %v685
        %v691 = vsel %vm687, %v690, %v689
        %vm692 = vcmask 1041409
        %v693 = vsel %vm692, %v691, %v688
        %vm695 = vcmask 123904
        %v696 = vsel %vm695, %v693, 0.0
        %697 = vadd.xlane.f32.xlu0 %v696
        %v698 = vpop.xlane.xlu0 %697
        %v699 = vpack.c.bf16 %v663, %v662
        %v700 = vpack.c.bf16 %v665, %v664
        %v703 = vunpack.c.l.b16 %v699
        %v704 = vunpack.c.h.b16 %v699
        %v705 = vunpack.c.l.b16 %v700
        %v706 = vunpack.c.h.b16 %v700
        %707 = vset.pattern.permute.xlu0 0
        %708 = vperm.xlu0 %707, %v703
        %v709 = vpop.permute.xlu0 %708
        %710 = vset.pattern.permute.xlu0 0
        %711 = vperm.xlu0 %710, %v704
        %v712 = vpop.permute.xlu0 %711
        %713 = vset.pattern.permute.xlu0 0
        %714 = vperm.xlu0 %713, %v705
        %v715 = vpop.permute.xlu0 %714
        %716 = vset.pattern.permute.xlu0 0
        %717 = vperm.xlu0 %716, %v706
        %v718 = vpop.permute.xlu0 %717
        %v719 = vperm.slane %v709, %v683
        %v720 = vperm.slane %v712, %v685
        %v721 = vsel %vm687, %v720, %v719
        %v722 = vperm.slane %v715, %v683
        %v723 = vperm.slane %v718, %v685
        %v724 = vsel %vm687, %v723, %v722
        %v725 = vsel %vm692, %v724, %v721
        %v726 = vpack.c.b16 %v725, %v725
        %vm727 = vcmask 130048
        %v729 = vsel %vm727, %v726, 0
        %731 = vmatpush.bf16.msra.mxu0 0
        %732 = vmatpush.bf16.msra.mxu0 0
        %733 = vmatpush.bf16.msra.mxu0 0
        %734 = vmatpush.bf16.msra.mxu0 0
        %735 = vmatpush.bf16.msra.mxu0 0
        %736 = vmatpush.bf16.msra.mxu0 0
        %737 = vmatpush.bf16.msra.mxu0 0
        %738 = vmatpush.bf16.msra.mxu0 %v437
        %739 = vmatmul.bf16.gmra.mxu0 %v729
        %v740 = vpop.f32.mrf.mxu0
        %v741 = vadd.f32 0.0, %v740
        %v742 = vpop.f32.mrf.mxu0
        %743 = vdwg.mxu0
        %744 = vmatpush.bf16.msra.mxu0 0
        %745 = vmatpush.bf16.msra.mxu0 0
        %746 = vmatpush.bf16.msra.mxu0 0
        %747 = vmatpush.bf16.msra.mxu0 0
        %748 = vmatpush.bf16.msra.mxu0 0
        %749 = vmatpush.bf16.msra.mxu0 0
        %750 = vmatpush.bf16.msra.mxu0 0
        %751 = vmatpush.bf16.msra.mxu0 %v438
        %752 = vmatmul.bf16.gmra.mxu0 %v729
        %v753 = vpop.f32.mrf.mxu0
        %v754 = vadd.f32 0.0, %v753
        %v755 = vpop.f32.mrf.mxu0
        %756 = vdwg.mxu0
        %v757 = vld [vmem:[%s264] sm:$0xf]
        %v758 = vsub.f32 %v698, %v741
        %v759 = vsub.f32 %v698, %v754
        %v762 = vrot.slane %v759, 6
        %vm763 = vcmask 1041408
        %v764 = vsel %vm763, %v758, %v762
        %v766 = vadd.f32 %v757, %v764
        %767 = vst [vmem:[%s264] sm:$0xf] %v766
        %s768 = sand.u32 %s173, 1
        %s769 = scalar_lea.sflag [#allocation5], %s768
        %s770 = sand.u32 %s173, 1
        %s771 = smul.addr %s770, 4
        %s772 = scalar_lea.vmem [#allocation4], %s771
        // Predicated region
        $region49: #{tpu_custom_call.1} parent=43 // pred_check
          %p773 = pneg %p183
        $region50: #{tpu_custom_call.1} parent=43 // pred_check_branch
          %775 = sbr.rel (%p773) target = $region52
        $region51: #{tpu_custom_call.1} parent=43 // pred_region
          %777 = vsyncadd %s769, 0
          %s778 = smul.addr %s24, 2
          %s779 = smul.addr %s778, 2
          %s780 = scalar_lea.hbm %s6, %s779
          %s782 = sshll.u32 %s772, 4
          %s783 = int_to_ptr.vmem [resolvable:$true] %s782
          %s784 = sshll.u32 %s780, 4
          %s785 = int_to_ptr.hbm [resolvable:$true] %s784
          %787 = dma.vmem_to_hbm [thread:$0]  %s783, 64, %s785, %s769
        $region52: #{tpu_custom_call.1} parent=43 // pred_fallthru
          _
      $region44: #{tpu_custom_call.1} parent=5 // pred_fallthru
        _
      %p788 = scmp.le.s32.totalorder 2, %s15
      // Predicated region
      $region53: #{tpu_custom_call.1} parent=5 // pred_check
        %p789 = pneg %p788
      $region54: #{tpu_custom_call.1} parent=5 // pred_check_branch
        %791 = sbr.rel (%p789) target = $region56
      $region55: #{tpu_custom_call.1} parent=5 // pred_region
        %s792 = ssub.s32 %s15, 2
        // Predicated region
        $region57: #{tpu_custom_call.1} parent=55 // pred_check
          %p793 = pneg %p189
        $region58: #{tpu_custom_call.1} parent=55 // pred_check_branch
          %795 = sbr.rel (%p793) target = $region60
        $region59: #{tpu_custom_call.1} parent=55 // pred_region
          %s796 = sand.u32 %s174, 1
          %s797 = scalar_lea.sflag [#allocation5], %s796
          %s798 = sand.u32 %s174, 1
          %s799 = smul.addr %s798, 4
          %s800 = scalar_lea.vmem [#allocation4], %s799
          %802 = dma.done %s797, 64
        $region60: #{tpu_custom_call.1} parent=55 // pred_fallthru
          _
      $region56: #{tpu_custom_call.1} parent=5 // pred_fallthru
        _
    $region6: #{tpu_custom_call.1} parent=1 // loop_footer
      %s19 = sadd.s32 1, %s15
    $region7: #{tpu_custom_call.1} parent=1 // loop_footer_branch
      %14 = sbr.rel target = $region3
    $region8: #{tpu_custom_call.1} parent=1 // loop_exit
      _
    %803 = vsyncpa [#allocation5], 1
    %s804 = scalar_lea.sflag [#allocation5], 1
    %805 = vsyncpa %s804, 1

</llo_original>
